<compile_context>
chip_gen: v6e
topology: v6e:2x2x1
jax: 0.10.0
libtpu: 0.0.40
codegen_flags: <defaults>
</compile_context>

<pallas_src>
import functools

import jax
import jax.numpy as jnp
from jax.experimental import pallas as pl
from jax.experimental.pallas import tpu as pltpu

# Deterministic enum values (mirrors AtomOriginType in the source repo).
ATOM_ORIGIN_TYPE = {
    "reactants": 0,          # AtomOriginType.REACTANT
    "products": 1,           # AtomOriginType.PRODUCT
    "dummy": 2,              # AtomOriginType.DUMMY
    "reactant_product": 3,   # AtomOriginType.REACTANT_PRODUCT
}


def _round_up(v, m):
    return ((v + m - 1) // m) * m


def _vmem_capacity_bytes():
    try:
        return int(pltpu.get_tpu_info().vmem_capacity_bytes)
    except Exception:
        return 64 << 20   # conservative fallback (v7x per-TensorCore VMEM)


def _footprint_bytes(tile_n, tile_d, g_pad, itemsize):
    """Per-core VMEM footprint estimate for one tile configuration."""
    x_buf = 2 * tile_n * tile_d * itemsize            # double-buffered features
    tag_buf = 2 * 8 * tile_n * 4                      # (1, tile_n) tags, 8-sublane padded
    acc_buf = 2 * g_pad * tile_d * 4                  # resident f32 accumulator
    onehot = g_pad * tile_n * (4 + max(itemsize, 2))  # iota i32 + one-hot in x.dtype
    return x_buf + tag_buf + acc_buf + onehot


def _choose_tiles(n, d, g_pad, itemsize, vmem_cap):
    """Pick (tile_n, tile_d); prefer untiled D, then the largest node tile."""
    budget = max(vmem_cap // 3, 4 << 20)   # leave headroom for compiler scratch
    d_opts = [d]
    if d % 128 == 0:
        d_opts += [t for t in (1024, 512, 256, 128) if t < d and d % t == 0]
    n_single = _round_up(n, 8)              # whole node axis in one tile
    for tile_d in d_opts:
        if n_single <= 2048 and _footprint_bytes(n_single, tile_d, g_pad,
                                                 itemsize) <= budget:
            return n_single, tile_d
        for tile_n in (2048, 1024, 512, 256, 128):
            if _footprint_bytes(tile_n, tile_d, g_pad, itemsize) <= budget:
                return tile_n, tile_d
    return 128, d_opts[-1]                  # large-G fallback (see TODO above)


def _num_core_splits(num_n_tiles, num_d_tiles):
    """Split the node axis across TensorCores only on multi-TC parts (v7x)
    and only when the D axis does not already give >= 2 parallel tiles."""
    if num_d_tiles >= 2 or num_n_tiles < 2:
        return 1
    try:
        kind = jax.devices()[0].device_kind.lower()
    except Exception:
        return 1
    return 2 if ("v7" in kind or "7x" in kind) else 1


def _atom_type_pool_kernel(mb_ref, x_ref, o_ref, *, n_rows, tile_n,
                           tiles_per_core, needs_tail_mask):
    """One grid step: accumulate one (node-tile, feature-tile) block.

    mb_ref: (1, tile_n)       int32   masked graph id per node (sentinel=g_pad)
    x_ref:  (tile_n, tile_d)  x.dtype node features for this tile
    o_ref:  (g_pad, tile_d)   float32 accumulator, resident across node axis
    """
    i = pl.program_id(2)   # node tile within this core chunk (innermost)

    @pl.when(i == 0)
    def _init():
        o_ref[...] = jnp.zeros_like(o_ref)

    x = x_ref[...]                                   # (tile_n, tile_d)
    g_pad, tn = o_ref.shape[0], x.shape[0]

    if needs_tail_mask:
        # x is streamed unpadded from HBM; rows past n_rows hold unspecified
        # data (0 * NaN = NaN on the MXU) and must be zeroed. limit <= 0 also
        # kills fully out-of-range (index-clamped) tiles of the core split.
        t = pl.program_id(0) * tiles_per_core + i    # global node-tile index
        limit = n_rows - t * tile_n
        rows = jax.lax.broadcasted_iota(jnp.int32, (tn, 1), 0)
        x = jnp.where(rows < limit, x, jnp.zeros_like(x))

    # one-hot scatter matrix: onehot[g, n] = 1 iff node n belongs to graph g
    # and passed the type mask (sentinel / padded tags match no g).
    graph_ids = jax.lax.broadcasted_iota(jnp.int32, (g_pad, tn), 0)
    onehot = (graph_ids == mb_ref[...]).astype(x.dtype)      # (g_pad, tile_n)

    # (g_pad, tn) @ (tn, td) -> (g_pad, td); f32 accumulation on the MXU.
    o_ref[...] += jax.lax.dot_general(
        onehot, x,
        dimension_numbers=(((1,), (0,)), ((), ())),
        preferred_element_type=jnp.float32,
    )


def atom_type_pool(x, batch_idx, atom_origin_type, *, num_graphs,
                   pool_type="reactants", aggr="add",
                   tile_n=None, tile_d=None, core_split=None):
    """Pallas implementation of AtomTypePool.forward.

    x:                [N, D] float32/bfloat16 node features
    batch_idx:        [N]    int              graph index of each node
    atom_origin_type: [N]    int              origin type of each node
    returns:          [num_graphs, D] float32
    """
    if aggr != "add":
        raise NotImplementedError("only aggr='add' is implemented in-kernel")
    if pool_type not in ATOM_ORIGIN_TYPE:
        raise ValueError(f"Invalid pool_type: {pool_type}")
    type_value = ATOM_ORIGIN_TYPE[pool_type]

    n, d = x.shape
    itemsize = jnp.dtype(x.dtype).itemsize

    # Accumulator height rounded to x.dtype's sublane packing (8/16/32) so the
    # one-hot MXU operand needs no relayout; extra rows are sliced off.
    sublane_pack = max(8, 8 * (4 // max(1, itemsize)))
    g_pad = _round_up(max(num_graphs, 1), sublane_pack)
    sentinel = g_pad                                   # outside [0, g_pad)

    vmem_cap = _vmem_capacity_bytes()
    auto_n, auto_d = _choose_tiles(n, d, g_pad, itemsize, vmem_cap)
    tile_n = auto_n if tile_n is None else tile_n
    tile_d = auto_d if tile_d is None else tile_d
    if d % tile_d != 0:
        tile_d = d
    num_d_tiles = d // tile_d

    num_n_tiles = pl.cdiv(n, tile_n)
    num_cores = (_num_core_splits(num_n_tiles, num_d_tiles)
                 if core_split is None else core_split)
    num_cores = max(1, min(num_cores, num_n_tiles))
    tiles_per_core = pl.cdiv(num_n_tiles, num_cores)
    last_block = num_n_tiles - 1
    n_tags = num_cores * tiles_per_core * tile_n
    needs_tail_mask = (n_tags != n)

    # Fuse type mask + batch into one int32 tag stream; only this tiny stream
    # is padded — x itself is streamed unpadded straight from HBM.
    masked_batch = jnp.where(
        atom_origin_type.astype(jnp.int32) == type_value,
        batch_idx.astype(jnp.int32),
        jnp.int32(sentinel),
    )
    if n_tags > n:
        masked_batch = jnp.pad(masked_batch, (0, n_tags - n),
                               constant_values=sentinel)
    masked_batch = masked_batch.reshape(1, n_tags)     # lane-major tags

    est = _footprint_bytes(tile_n, tile_d, g_pad, itemsize)
    vmem_limit = int(max(32 << 20, min(est * 2, vmem_cap - (8 << 20))))

    kernel = functools.partial(
        _atom_type_pool_kernel,
        n_rows=n, tile_n=tile_n, tiles_per_core=tiles_per_core,
        needs_tail_mask=needs_tail_mask,
    )

    processed_rows = num_cores * tiles_per_core * tile_n
    cost = pl.CostEstimate(
        flops=2 * processed_rows * g_pad * d,
        transcendentals=0,
        bytes_accessed=(n * d * itemsize + n_tags * 4 * num_d_tiles
                        + num_cores * g_pad * d * 4),
    )

    out_padded = pl.pallas_call(
        kernel,
        out_shape=jax.ShapeDtypeStruct((num_cores * g_pad, d), jnp.float32),
        grid_spec=pltpu.PrefetchScalarGridSpec(
            num_scalar_prefetch=0,
            # (core chunk [parallel], feature tile [parallel],
            #  node tile [reduction -> arbitrary, innermost so the output
            #  accumulator block stays resident in VMEM]).
            grid=(num_cores, num_d_tiles, tiles_per_core),
            in_specs=[
                # tags: padded to n_tags, so every block is in bounds.
                pl.BlockSpec((1, tile_n),
                             lambda c, j, i: (0, c * tiles_per_core + i)),
                # x: unpadded; clamp the block index so fully out-of-range
                # logical tiles (uneven core split) still read valid memory —
                # their rows are zeroed in-kernel via the tail mask.
                pl.BlockSpec(
                    (tile_n, tile_d),
                    lambda c, j, i: (
                        jnp.minimum(c * tiles_per_core + i, last_block), j)),
            ],
            # Per-core partial accumulator: block row index = core chunk.
            out_specs=pl.BlockSpec((g_pad, tile_d), lambda c, j, i: (c, j)),
        ),
        compiler_params=pltpu.CompilerParams(
            dimension_semantics=("parallel", "parallel", "arbitrary"),
            vmem_limit_bytes=vmem_limit,
        ),
        cost_estimate=cost,
    )(masked_batch, x)

    if num_cores > 1:
        out_padded = out_padded.reshape(num_cores, g_pad, d).sum(axis=0)
    return out_padded[:num_graphs]


def _reference(x, batch_idx, atom_origin_type, num_graphs, type_value):
    mask = (atom_origin_type == type_value).astype(jnp.float32)[:, None]
    return jax.ops.segment_sum(x.astype(jnp.float32) * mask, batch_idx,
                               num_segments=num_graphs)


if __name__ == "__main__":
    key = jax.random.PRNGKey(0)
    k_x, k_t, k_x2, k_t2, k_b2 = jax.random.split(key, 5)

    pool_type = "reactants"
    type_value = ATOM_ORIGIN_TYPE[pool_type]

    # --- small shapes, f32 path ---
    N, D, G = 32, 32, 4
    x = jax.random.normal(k_x, (N, D), dtype=jnp.float32)
    batch_idx = jnp.repeat(jnp.arange(G, dtype=jnp.int32), N // G)
    atom_origin_type = jax.random.randint(k_t, (N,), 0, 4, dtype=jnp.int32)

    out = jax.block_until_ready(
        atom_type_pool(x, batch_idx, atom_origin_type,
                       num_graphs=G, pool_type=pool_type, aggr="add"))
    ref = _reference(x, batch_idx, atom_origin_type, G, type_value)
    assert out.shape == (G, D)
    assert jnp.allclose(out, ref, atol=1e-5, rtol=1e-5), "f32 small mismatch"

    # --- small shapes, bf16 fast path (accumulation stays f32 in-kernel) ---
    out_bf = jax.block_until_ready(
        atom_type_pool(x.astype(jnp.bfloat16), batch_idx, atom_origin_type,
                       num_graphs=G, pool_type=pool_type, aggr="add"))
    ref_bf = _reference(x.astype(jnp.bfloat16), batch_idx, atom_origin_type,
                        G, type_value)
    assert out_bf.shape == (G, D)
    assert jnp.allclose(out_bf, ref_bf, atol=1e-3, rtol=1e-3), "bf16 mismatch"

    # --- multi-tile + ragged tail + forced 2-way core split (unpadded x) ---
    # Verifies the no-pad path, in-kernel tail zeroing, clamped index map,
    # partial-accumulator summation, and f32 exactness on larger sums.
    N2, D2, G2 = 700, 128, 10
    x2 = jax.random.normal(k_x2, (N2, D2), dtype=jnp.float32)
    batch2 = jax.random.randint(k_b2, (N2,), 0, G2, dtype=jnp.int32)
    types2 = jax.random.randint(k_t2, (N2,), 0, 4, dtype=jnp.int32)
    out2 = jax.block_until_ready(
        atom_type_pool(x2, batch2, types2, num_graphs=G2,
                       pool_type="products", aggr="add",
                       tile_n=256, core_split=2))
    ref2 = _reference(x2, batch2, types2, G2, ATOM_ORIGIN_TYPE["products"])
    assert out2.shape == (G2, D2)
    assert jnp.allclose(out2, ref2, atol=1e-4, rtol=1e-5), "multi-tile mismatch"

    print("KERNEL_OK")
</pallas_src>

<mosaic_0001>
module attributes {stable_mosaic.version = 11 : i64} {
  func.func @_atom_type_pool_kernel(%arg0: i32, %arg1: i32, %arg2: i32, %arg3: memref<1x32xi32, #tpu.memory_space<vmem>>, %arg4: memref<32x32xf32, #tpu.memory_space<vmem>>, %arg5: memref<8x32xf32, #tpu.memory_space<vmem>>) attributes {dimension_semantics = [#tpu.dimension_semantics<parallel>, #tpu.dimension_semantics<parallel>, #tpu.dimension_semantics<arbitrary>], iteration_bounds = array<i64: 1, 1, 1>, scalar_prefetch = 0 : i64, scratch_operands = 0 : i64, tpu.core_type = #tpu.core_type<tc>, window_params = [{transform_indices = @transform_0, window_bounds = array<i64: 1, 32>}, {transform_indices = @transform_1, window_bounds = array<i64: 32, 32>}, {transform_indices = @transform_2, window_bounds = array<i64: 8, 32>}]} {
    %c0_i32 = arith.constant 0 : i32
    %0 = arith.cmpi eq, %arg2, %c0_i32 : i32
    %1 = arith.extui %0 : i1 to i32
    %c0_i32_0 = arith.constant 0 : i32
    %2 = arith.cmpi ne, %1, %c0_i32_0 : i32
    scf.if %2 {
      %cst_8 = arith.constant 0.000000e+00 : f32
      %14 = vector.broadcast %cst_8 : f32 to vector<8x32xf32>
      %c0_9 = arith.constant 0 : index
      %c0_10 = arith.constant 0 : index
      %15 = vector.load %arg5[%c0_9, %c0_10] : memref<8x32xf32, #tpu.memory_space<vmem>>, vector<8x32xf32>
      tpu.vector_store %arg5[%c0_9, %c0_10], %14 {strides = array<i32>} : memref<8x32xf32, #tpu.memory_space<vmem>>, vector<8x32xf32>,
    } else {
    }
    %c0 = arith.constant 0 : index
    %c0_1 = arith.constant 0 : index
    %3 = vector.load %arg4[%c0, %c0_1] : memref<32x32xf32, #tpu.memory_space<vmem>>, vector<32x32xf32>
    %4 = tpu.iota {dimensions = array<i32: 0>} : vector<8x32xi32>
    %c0_2 = arith.constant 0 : index
    %c0_3 = arith.constant 0 : index
    %5 = vector.load %arg3[%c0_2, %c0_3] : memref<1x32xi32, #tpu.memory_space<vmem>>, vector<1x32xi32>
    %6 = vector.broadcast %5 : vector<1x32xi32> to vector<8x32xi32>
    %7 = arith.cmpi eq, %4, %6 : vector<8x32xi32>
    %8 = arith.extui %7 : vector<8x32xi1> to vector<8x32xi32>
    %9 = arith.sitofp %8 : vector<8x32xi32> to vector<8x32xf32>
    %c0_4 = arith.constant 0 : index
    %c0_5 = arith.constant 0 : index
    %10 = vector.load %arg5[%c0_4, %c0_5] : memref<8x32xf32, #tpu.memory_space<vmem>>, vector<8x32xf32>
    %cst = arith.constant dense<0.000000e+00> : vector<8x32xf32>
    %11 = tpu.matmul %9, %3, %cst {dimension_numbers = #tpu.dot_dimension_numbers<[1], [0], [0], [1], [0, 0, 1, 1], [], []>} : vector<8x32xf32>, vector<32x32xf32>, vector<8x32xf32> -> vector<8x32xf32>
    %12 = arith.addf %10, %11 : vector<8x32xf32>
    %c0_6 = arith.constant 0 : index
    %c0_7 = arith.constant 0 : index
    %13 = vector.load %arg5[%c0_6, %c0_7] : memref<8x32xf32, #tpu.memory_space<vmem>>, vector<8x32xf32>
    tpu.vector_store %arg5[%c0_6, %c0_7], %12 {strides = array<i32>} : memref<8x32xf32, #tpu.memory_space<vmem>>, vector<8x32xf32>,
    return
  }
  func.func @transform_0(%arg0: i32, %arg1: i32, %arg2: i32) -> (i32, i32) {
    %c1_i32 = arith.constant 1 : i32
    %0 = arith.muli %arg0, %c1_i32 : i32
    %1 = arith.addi %0, %arg2 : i32
    %c0_i32 = arith.constant 0 : i32
    %c0_i32_0 = arith.constant 0 : i32
    return %c0_i32, %1 : i32, i32
  }
  func.func @transform_1(%arg0: i32, %arg1: i32, %arg2: i32) -> (i32, i32) {
    %c1_i32 = arith.constant 1 : i32
    %0 = arith.muli %arg0, %c1_i32 : i32
    %1 = arith.addi %0, %arg2 : i32
    %c0_i32 = arith.constant 0 : i32
    %2 = arith.minsi %1, %c0_i32 : i32
    %c0_i32_0 = arith.constant 0 : i32
    return %2, %arg1 : i32, i32
  }
  func.func @transform_2(%arg0: i32, %arg1: i32, %arg2: i32) -> (i32, i32) {
    %c0_i32 = arith.constant 0 : i32
    return %arg0, %arg1 : i32, i32
  }
}

</mosaic_0001>

<llo_original>
// kernel: tpu_custom_call.1
$region0: #{tpu_custom_call.1}
  #allocation0 [shape = 'u32[]', space=smem, size = 0x4, offset = 0x4, fixed_abs, tag = 'smem constant byte address 0x4 - core index']
  #allocation1 [shape = 'u32[144,128]{1,0:T(1,128)}', space=vmem, size = 0x12000, scoped, tag = 'internal scratch']
  %s0 = inlined_call_operand.hbm [shape: s32[1,32], index: 0, kind: input, shape index: {}]
  %s1 = inlined_call_operand.hbm [shape: f32[32,32], index: 1, kind: input, shape index: {}]
  %s2 = inlined_call_operand.hbm [shape: f32[8,32], index: 2, kind: output, shape index: {}]
  %s3 = sld [smem:[#allocation0]]
  $region30: #{tpu_custom_call.1} parent=0
    _
  %s5 = ssub.s32 1, %s3
  %s6 = scalar_select 0, %s5, %s3
  $region1: #{tpu_custom_call.1} parent=0
    #allocation2 [shape = 'u8[512]{0}', space=vmem, size = 0x400, scoped, tag = 'input window, operand 0, single buffered']
    #allocation3 [shape = 's32[1]{0}', space=sflag, size = 0x4, scoped, tag = 'scoped memory for tpu_custom_call.1']
    #allocation4 [shape = 's32[1]{0}', space=sflag, size = 0x4, scoped, tag = 'scoped memory for tpu_custom_call.1']
    #allocation5 [shape = 'u8[16384]{0}', space=vmem, size = 0x4000, scoped, tag = 'input window, operand 1, single buffered']
    #allocation6 [shape = 's32[1]{0}', space=sflag, size = 0x4, scoped, tag = 'scoped memory for tpu_custom_call.1']
    #allocation7 [shape = 'u8[4096]{0}', space=vmem, size = 0x1000, scoped, tag = 'output window, operand 0, single buffered']
    %7 = vsyncpa [#allocation3], 0
    %8 = vsyncpa [#allocation6], 0
    %9 = vsyncpa [#allocation4], 0
    // Predicated region
    $region2: #{tpu_custom_call.1} parent=1 // pred_check
      _
    $region3: #{tpu_custom_call.1} parent=1 // pred_check_branch
      %11 = sbr.rel (0) target = $region5
    $region4: #{tpu_custom_call.1} parent=1 // pred_region
      %s12 = sadd.s32 0, 0
      %s14 = ssub.s32 16, 16
      %15 = vsyncadd [#allocation3], %s14
      %s16 = smul.addr %s12, 16
      %s17 = scalar_lea.hbm %s0, %s16
      %s19 = sshll.u32 [#allocation2], 4
      %s20 = int_to_ptr.vmem [resolvable:$true] %s19
      %22 = dma.hbm_to_vmem [thread:$0]  %s17, 16, %s20, [#allocation3]
    $region5: #{tpu_custom_call.1} parent=1 // pred_fallthru
      _
    // Predicated region
    $region6: #{tpu_custom_call.1} parent=1 // pred_check
      _
    $region7: #{tpu_custom_call.1} parent=1 // pred_check_branch
      %24 = sbr.rel (0) target = $region9
    $region8: #{tpu_custom_call.1} parent=1 // pred_region
      %s25 = sadd.s32 0, 0
      %p26 = scmp.lt.s32.totalorder %s25, 0
      %s27 = scalar_select %p26, %s25, 0
      %s28 = smul.u32 4, %s27
      %s30 = ssub.s32 512, 512
      %31 = vsyncadd [#allocation6], %s30
      %s32 = smul.addr %s28, 128
      %s33 = scalar_lea.hbm %s1, %s32
      %s34 = sshll.u32 [#allocation5], 4
      %s35 = int_to_ptr.vmem [resolvable:$true] %s34
      %40 = dma.hbm_to_vmem [thread:$0]  %s33, 512, %s35, [#allocation6], 128, 128, 8
    $region9: #{tpu_custom_call.1} parent=1 // pred_fallthru
      _
    // Predicated region
    $region10: #{tpu_custom_call.1} parent=1 // pred_check
      _
    $region11: #{tpu_custom_call.1} parent=1 // pred_check_branch
      %42 = sbr.rel (0) target = $region13
    $region12: #{tpu_custom_call.1} parent=1 // pred_region
      %43 = dma.done [#allocation3], 16
    $region13: #{tpu_custom_call.1} parent=1 // pred_fallthru
      _
    // Predicated region
    $region14: #{tpu_custom_call.1} parent=1 // pred_check
      _
    $region15: #{tpu_custom_call.1} parent=1 // pred_check_branch
      %45 = sbr.rel (0) target = $region17
    $region16: #{tpu_custom_call.1} parent=1 // pred_region
      %46 = dma.done [#allocation6], 512
    $region17: #{tpu_custom_call.1} parent=1 // pred_fallthru
      _
    %s47 = sadd.s32 0, 0
    %s48 = sadd.s32 0, 0
    %p49 = scmp.lt.s32.totalorder %s48, 0
    %s50 = scalar_select %p49, %s48, 0
    %s51 = smul.u32 4, %s50
    %p52 = scmp.eq.s32.totalorder 0, 0
    // Predicated region
    $region18: #{tpu_custom_call.1} parent=1 // pred_check
      %p53 = pneg %p52
    $region19: #{tpu_custom_call.1} parent=1 // pred_check_branch
      %55 = sbr.rel (%p53) target = $region21
    $region20: #{tpu_custom_call.1} parent=1 // pred_region
      %vm56 = vcmask 261120
      %57 = vst.msk [vmem:[#allocation7] sm:$0xff] %vm56, 0.0
    $region21: #{tpu_custom_call.1} parent=1 // pred_fallthru
      _
    %v58 = vld [vmem:[#allocation5] sm:$0xff]
    %v59 = vld [vmem:[#allocation5 + $0x8] sm:$0xff]
    %v60 = vld [vmem:[#allocation5 + $0x10] sm:$0xff]
    %v61 = vld [vmem:[#allocation5 + $0x18] sm:$0xff]
    %v62 = vlaneseq
    %v63 = vshrl.u32 %v62, 7
    %v64 = vld [vmem:[#allocation2] sm:$0x1]
    %v65 = vlaneseq
    %v66 = vshrl.u32 %v65, 7
    %v67 = vsub.s32 0, %v66
    %v68 = vrot.slane %v64, %v67
    %vm69 = vcmp.eq.s32.totalorder %v63, %v68
    %v70 = vsel %vm69, 1, 0
    %v71 = vcvt.s32.f32 %v70
    %v72 = vld [vmem:[#allocation7] sm:$0xff]
    %vm73 = vcmask 261120
    %v75 = vsel %vm73, %v71, 0
    %77 = vmatprep.subr.mxu0 0.0
    %78 = vmatpush1.msra.mxu0 0.0
    %79 = vmatprep.subr.mxu0 0.0
    %80 = vmatpush1.msra.mxu0 0.0
    %81 = vmatprep.subr.mxu0 0.0
    %82 = vmatpush1.msra.mxu0 0.0
    %83 = vmatprep.subr.mxu0 0.0
    %84 = vmatpush1.msra.mxu0 0.0
    %85 = vmatprep.subr.mxu0 0.0
    %86 = vmatpush1.msra.mxu0 0.0
    %87 = vmatprep.subr.mxu0 0.0
    %88 = vmatpush1.msra.mxu0 0.0
    %89 = vmatprep.subr.mxu0 0.0
    %90 = vmatpush1.msra.mxu0 0.0
    %91 = vmatprep.subr.mxu0 0.0
    %92 = vmatpush1.msra.mxu0 0.0
    %93 = vmatprep.subr.mxu0 0.0
    %94 = vmatpush1.msra.mxu0 0.0
    %95 = vmatprep.subr.mxu0 0.0
    %96 = vmatpush1.msra.mxu0 0.0
    %97 = vmatprep.subr.mxu0 0.0
    %98 = vmatpush1.msra.mxu0 0.0
    %99 = vmatprep.subr.mxu0 0.0
    %100 = vmatpush1.msra.mxu0 0.0
    %101 = vmatprep.subr.mxu0 0.0
    %102 = vmatpush1.msra.mxu0 %v61
    %103 = vmatprep.subr.mxu0 0.0
    %104 = vmatpush1.msra.mxu0 %v60
    %105 = vmatprep.subr.mxu0 0.0
    %106 = vmatpush1.msra.mxu0 %v59
    %107 = vmatprep.subr.mxu0 0.0
    %108 = vmatpush1.msra.mxu0 %v58
    %109 = vmatprep.subr.mxu0 0.0
    %110 = vmatpush2.msra.mxu0 0.0
    %111 = vmatprep.subr.mxu0 0.0
    %112 = vmatpush2.msra.mxu0 0.0
    %113 = vmatprep.subr.mxu0 0.0
    %114 = vmatpush2.msra.mxu0 0.0
    %115 = vmatprep.subr.mxu0 0.0
    %116 = vmatpush2.msra.mxu0 0.0
    %117 = vmatprep.subr.mxu0 0.0
    %118 = vmatpush2.msra.mxu0 0.0
    %119 = vmatprep.subr.mxu0 0.0
    %120 = vmatpush2.msra.mxu0 0.0
    %121 = vmatprep.subr.mxu0 0.0
    %122 = vmatpush2.msra.mxu0 0.0
    %123 = vmatprep.subr.mxu0 0.0
    %124 = vmatpush2.msra.mxu0 0.0
    %125 = vmatprep.subr.mxu0 0.0
    %126 = vmatpush2.msra.mxu0 0.0
    %127 = vmatprep.subr.mxu0 0.0
    %128 = vmatpush2.msra.mxu0 0.0
    %129 = vmatprep.subr.mxu0 0.0
    %130 = vmatpush2.msra.mxu0 0.0
    %131 = vmatprep.subr.mxu0 0.0
    %132 = vmatpush2.msra.mxu0 0.0
    %133 = vmatprep.subr.mxu0 0.0
    %134 = vmatpush2.msra.mxu0 0.0
    %135 = vmatprep.subr.mxu0 0.0
    %136 = vmatpush2.msra.mxu0 0.0
    %137 = vmatprep.subr.mxu0 0.0
    %138 = vmatpush2.msra.mxu0 0.0
    %139 = vmatprep.subr.mxu0 0.0
    %140 = vmatpush2.msra.mxu0 0.0
    %141 = vmatprep.mubr.f32.mxu0 0.0
    %142 = vmatmul.mubr.f32.gmra.mxu0 %v75
    %v143 = vpop.f32.mrf.mxu0
    %v144 = vadd.f32 0.0, %v143
    %v145 = vpop.f32.mrf.mxu0
    %146 = vdwg.mxu0
    %v147 = vadd.f32 %v72, %v144
    %148 = vst.msk [vmem:[#allocation7] sm:$0xff] %vm73, %v147
    // Predicated region
    $region22: #{tpu_custom_call.1} parent=1 // pred_check
      _
    $region23: #{tpu_custom_call.1} parent=1 // pred_check_branch
      %150 = sbr.rel (0) target = $region25
    $region24: #{tpu_custom_call.1} parent=1 // pred_region
      %s152 = ssub.s32 128, 128
      %153 = vsyncadd [#allocation4], %s152
      %s155 = sshll.u32 [#allocation7], 4
      %s156 = int_to_ptr.vmem [resolvable:$true] %s155
      %158 = dma.vmem_to_hbm [thread:$0]  %s156, 128, %s2, [#allocation4]
    $region25: #{tpu_custom_call.1} parent=1 // pred_fallthru
      _
    // Predicated region
    $region26: #{tpu_custom_call.1} parent=1 // pred_check
      _
    $region27: #{tpu_custom_call.1} parent=1 // pred_check_branch
      %160 = sbr.rel (0) target = $region29
    $region28: #{tpu_custom_call.1} parent=1 // pred_region
      %161 = dma.done [#allocation4], 128
    $region29: #{tpu_custom_call.1} parent=1 // pred_fallthru
      _
    %162 = vsyncpa [#allocation3], 1
    %163 = vsyncpa [#allocation6], 1
    %164 = vsyncpa [#allocation4], 1

</llo_original>
